<compile_context>
chip_gen: v7x
topology: tpu7x:2x2x1
jax: 0.10.0
libtpu: 0.0.40
codegen_flags: <defaults>
</compile_context>

<pallas_src>
import functools

import jax
import jax.numpy as jnp
from jax.experimental import pallas as pl
from jax.experimental.pallas import tpu as pltpu


def swish_param_kernel(beta_ref, x_ref, o_ref):
    # beta_ref: (1,) f32 in SMEM; x_ref / o_ref: (tm, C) VMEM tiles.
    beta = beta_ref[0]                           # scalar read from SMEM
    x = x_ref[...].astype(jnp.float32)           # compute in f32 (EUP sigmoid)
    o_ref[...] = (x * jax.nn.sigmoid(x * beta)).astype(o_ref.dtype)


@functools.partial(jax.jit, static_argnames=("tm", "lanes"))
def swish_param(x, beta, *, tm=512, lanes=512):
    """Parametric swish: x * sigmoid(beta * x). x: any shape; beta: scalar."""
    orig_shape = x.shape
    T = x.size

    # Lane-dense 2-D packing: last dim is a multiple of 128.
    C = lanes if T >= lanes else 128
    rows = pl.cdiv(T, C)
    # Row tile: large (multiple of 8) when there is enough work, otherwise the
    # whole (possibly non-multiple-of-8) row extent as a single full block.
    tm_eff = tm if rows > tm else rows
    rows_p = pl.cdiv(rows, tm_eff) * tm_eff
    Tp = rows_p * C

    flat = x.reshape(-1)
    if Tp != T:
        # Pad only the flat remainder (at most tm_eff*C - 1 elements).
        flat = jnp.pad(flat, (0, Tp - T))
    x2d = flat.reshape(rows_p, C)

    beta_arr = jnp.asarray(beta, jnp.float32).reshape(1)

    out2d = pl.pallas_call(
        swish_param_kernel,
        out_shape=jax.ShapeDtypeStruct((rows_p, C), x.dtype),
        grid_spec=pltpu.PrefetchScalarGridSpec(
            num_scalar_prefetch=0,
            grid=(rows_p // tm_eff,),
            in_specs=[
                # beta: tiny scalar parameter, kept whole in SMEM (no DMA tiling).
                pl.BlockSpec(memory_space=pltpu.MemorySpace.SMEM),
                # x tile: (tm_eff, C) rows x lanes, double-buffered by Pallas.
                pl.BlockSpec((tm_eff, C), lambda i: (i, 0)),
            ],
            out_specs=pl.BlockSpec((tm_eff, C), lambda i: (i, 0)),
        ),
        compiler_params=pltpu.CompilerParams(
            dimension_semantics=("parallel",),   # megacore sharding on v7x
        ),
    )(beta_arr, x2d)

    out = out2d.reshape(-1)
    if Tp != T:
        out = out[:T]
    return out.reshape(orig_shape)


def swish_reference(x, beta):
    return x * jax.nn.sigmoid(x * beta)


if __name__ == "__main__":
    key = jax.random.PRNGKey(0)
    k1, k2 = jax.random.split(key)

    # Shapes consistent with an elementwise activation module.
    x = jax.random.normal(k1, (2, 4, 16, 16), jnp.float32)
    beta = jnp.float32(0.75)   # the module's learnable scalar parameter

    out = swish_param(x, beta)
    out = jax.block_until_ready(out)

    ref = swish_reference(x, beta)
    assert out.shape == x.shape, out.shape
    assert jnp.allclose(out, ref, atol=1e-5, rtol=1e-5), float(
        jnp.max(jnp.abs(out - ref))
    )

    # Ragged shape exercises the pad / slice path.
    x2 = jax.random.normal(k2, (3, 7, 5), jnp.float32)
    out2 = jax.block_until_ready(swish_param(x2, beta))
    ref2 = swish_reference(x2, beta)
    assert out2.shape == x2.shape, out2.shape
    assert jnp.allclose(out2, ref2, atol=1e-5, rtol=1e-5), float(
        jnp.max(jnp.abs(out2 - ref2))
    )

    print("KERNEL_OK")
</pallas_src>

<mosaic_0001>
module attributes {stable_mosaic.version = 11 : i64} {
  func.func @swish_param_kernel(%arg0: i32, %arg1: memref<1xf32, #tpu.memory_space<smem>>, %arg2: memref<4x512xf32, #tpu.memory_space<vmem>>, %arg3: memref<4x512xf32, #tpu.memory_space<vmem>>) attributes {dimension_semantics = [#tpu.dimension_semantics<parallel>], iteration_bounds = array<i64: 1>, scalar_prefetch = 0 : i64, scratch_operands = 0 : i64, tpu.core_type = #tpu.core_type<tc>, window_params = [{transform_indices = @transform_0, window_bounds = array<i64: 1>}, {transform_indices = @transform_1, window_bounds = array<i64: 4, 512>}, {transform_indices = @transform_2, window_bounds = array<i64: 4, 512>}]} {
    %c0 = arith.constant 0 : index
    %0 = memref.load %arg1[%c0] : memref<1xf32, #tpu.memory_space<smem>>
    %c0_0 = arith.constant 0 : index
    %c0_1 = arith.constant 0 : index
    %1 = vector.load %arg2[%c0_0, %c0_1] : memref<4x512xf32, #tpu.memory_space<vmem>>, vector<4x512xf32>
    %2 = vector.broadcast %0 : f32 to vector<4x512xf32>
    %3 = arith.mulf %1, %2 : vector<4x512xf32>
    %4 = arith.negf %3 : vector<4x512xf32>
    %5 = math.exp %4 : vector<4x512xf32>
    %cst = arith.constant 1.000000e+00 : f32
    %6 = vector.broadcast %cst : f32 to vector<4x512xf32>
    %7 = arith.addf %6, %5 : vector<4x512xf32>
    %8 = arith.divf %6, %7 : vector<4x512xf32>
    %9 = arith.mulf %1, %8 : vector<4x512xf32>
    %c0_2 = arith.constant 0 : index
    %c0_3 = arith.constant 0 : index
    %10 = vector.load %arg3[%c0_2, %c0_3] : memref<4x512xf32, #tpu.memory_space<vmem>>, vector<4x512xf32>
    tpu.vector_store %arg3[%c0_2, %c0_3], %9 {strides = array<i32>} : memref<4x512xf32, #tpu.memory_space<vmem>>, vector<4x512xf32>,
    return
  }
  func.func @transform_0(%arg0: i32) -> i32 {
    %c0_i32 = arith.constant 0 : i32
    %c0_i32_0 = arith.constant 0 : i32
    return %c0_i32 : i32
  }
  func.func @transform_1(%arg0: i32) -> (i32, i32) {
    %c0_i32 = arith.constant 0 : i32
    %c0_i32_0 = arith.constant 0 : i32
    return %arg0, %c0_i32 : i32, i32
  }
  func.func @transform_2(%arg0: i32) -> (i32, i32) {
    %c0_i32 = arith.constant 0 : i32
    %c0_i32_0 = arith.constant 0 : i32
    return %arg0, %c0_i32 : i32, i32
  }
}

</mosaic_0001>

<llo_original>
// kernel: swish_param.1
$region0: #{swish_param.1}
  #allocation0 [shape = 'u32[]', space=smem, size = 0x4, offset = 0x4, fixed_abs, tag = 'smem constant byte address 0x4 - core index']
  #allocation1 [shape = 'u32[144,128]{1,0:T(1,128)}', space=vmem, size = 0x12000, scoped, tag = 'internal scratch']
  #allocation2 [shape = 'f32[1]{0:T(128)S(6)}', space=smem, size = 0x200, scoped, tag = 'scoped memory for swish_param.1']
  %s0 = inlined_call_operand.<no memory space> [shape: f32[1], index: 0, kind: input, shape index: {}]
  %s1 = inlined_call_operand.vmem [shape: f32[4,512], index: 1, kind: input, shape index: {}]
  %s2 = inlined_call_operand.vmem [shape: f32[4,512], index: 2, kind: output, shape index: {}]
  %s3 = sld [smem:[#allocation0]]
  $region18: #{swish_param.1} parent=0
    _
  %s5 = ssub.s32 1, %s3
  %s6 = scalar_select 0, %s5, %s3
  %7 = sst [smem:[#allocation2]] %s0
  // Predicated region
  $region2: #{swish_param.1} parent=0 // pred_check
    _
  $region3: #{swish_param.1} parent=0 // pred_check_branch
    %9 = sbr.rel (0) target = $region5
  $region4: #{swish_param.1} parent=0 // pred_region
    _
  $region5: #{swish_param.1} parent=0 // pred_fallthru
    _
  // Predicated region
  $region6: #{swish_param.1} parent=0 // pred_check
    _
  $region7: #{swish_param.1} parent=0 // pred_check_branch
    %11 = sbr.rel (0) target = $region9
  $region8: #{swish_param.1} parent=0 // pred_region
    _
  $region9: #{swish_param.1} parent=0 // pred_fallthru
    _
  %s12 = sld [smem:[#allocation2]]
  %v13 = vld [vmem:[%s1] sm:$0xff]
  %v14 = vld [vmem:[%s1 + $0x8] sm:$0xff]
  %v15 = vstv %s12
  %v16 = vmul.f32 %v13, %v15
  %v17 = vmul.f32 %v14, %v15
  %v18 = vxor.u32 %v16, 2147483648
  %v19 = vxor.u32 %v17, 2147483648
  %v20 = vmul.f32 %v18, 1.442695
  %v21 = vpow.pop %v20
  %v22 = vmul.f32 %v19, 1.442695
  %v23 = vpow.pop %v22
  %v24 = vadd.f32 %v21, 1.0
  %v25 = vadd.f32 %v23, 1.0
  %v26 = vrcp.pop %v24
  %v27 = vmul.f32 1.0, %v26
  %v28 = vrcp.pop %v25
  %v29 = vmul.f32 1.0, %v28
  %v30 = vmul.f32 %v13, %v27
  %v31 = vmul.f32 %v14, %v29
  %32 = vst [vmem:[%s2] sm:$0xff] %v30
  %33 = vst [vmem:[%s2 + $0x8] sm:$0xff] %v31
  // Predicated region
  $region10: #{swish_param.1} parent=0 // pred_check
    _
  $region11: #{swish_param.1} parent=0 // pred_check_branch
    %35 = sbr.rel (0) target = $region13
  $region12: #{swish_param.1} parent=0 // pred_region
    _
  $region13: #{swish_param.1} parent=0 // pred_fallthru
    _
  // Predicated region
  $region14: #{swish_param.1} parent=0 // pred_check
    _
  $region15: #{swish_param.1} parent=0 // pred_check_branch
    %37 = sbr.rel (0) target = $region17
  $region16: #{swish_param.1} parent=0 // pred_region
    _
  $region17: #{swish_param.1} parent=0 // pred_fallthru
    _

</llo_original>
